<compile_context>
chip_gen: v7x
topology: tpu7x:2x2x1
jax: 0.10.0
libtpu: 0.0.40
codegen_flags: <defaults>
</compile_context>

<pallas_src>
import jax
import jax.numpy as jnp
from jax.experimental import pallas as pl
from jax.experimental.pallas import tpu as pltpu

_BN_EPS = 1e-5


def _depth_reducer_kernel(patches_ref, depth_ref, w1_ref, bias_ref, w2t_ref,
                          out_ref, tpad_ref):
    # patches_ref : (9*Cin, H*W) bf16  im2col of feat, pixels lane-dense
    # depth_ref   : (D, H*W)     f32   depth, natural flat layout
    # w1_ref      : (Cmid, 9*Cin) bf16 conv1 weights with BN scale folded in
    # bias_ref    : (Cmid, 1)    f32   folded conv1-bias + BN shift
    # w2t_ref     : (9, Cmid)    f32   conv2 weights transposed (row = tap ky*3+kx)
    # out_ref     : (D, W)             (depth * softmax_H(logits)).sum(H)
    # tpad_ref    : (9, pad + H*W + pad) f32 scratch: zero-margined per-tap rows
    HW = patches_ref.shape[1]
    W = out_ref.shape[1]
    H = HW // W
    pad = (tpad_ref.shape[1] - HW) // 2          # >= W + 1 by construction

    # ---- conv1: ONE im2col matmul on the MXU (bf16 in, f32 accumulate) ----
    hidden = jnp.dot(w1_ref[...], patches_ref[...],
                     preferred_element_type=jnp.float32)          # (Cmid, HW)
    # folded BatchNorm bias + ReLU (scale already folded into w1)
    hidden = jnp.maximum(hidden + bias_ref[...], 0.0)

    # ---- conv2 channel reduction on the MXU: per-tap rows ----
    # t[tap, f] = sum_c w2[c, tap] * hidden[c, f]
    t = jnp.dot(w2t_ref[...], hidden, preferred_element_type=jnp.float32)  # (9, HW)

    # ---- conv2 spatial taps: shifted full-width loads from a zero-margined
    #      scratch, accumulated in vregs (one aligned store, no RMW loop) ----
    tpad_ref[...] = jnp.zeros(tpad_ref.shape, tpad_ref.dtype)
    tpad_ref[:, pad:pad + HW] = t

    x_idx = jax.lax.broadcasted_iota(jnp.int32, (1, HW), 1) % W
    not_last = x_idx < (W - 1)        # valid destinations for ox = +1 taps
    not_first = x_idx > 0             # valid destinations for ox = -1 taps

    logits = t[4:5, :]                # center tap (oy = ox = 0)
    for ky in range(3):
        for kx in range(3):
            if ky == 1 and kx == 1:
                continue
            oy, ox = ky - 1, kx - 1
            s = oy * W + ox
            tap = ky * 3 + kx
            # v[f] = t[tap, f + s], zero-filled where f + s falls off the image
            # rows (the margin is pre-zeroed); horizontal wrap handled by masks.
            v = tpad_ref[tap:tap + 1, pad + s:pad + s + HW]
            if ox == 1:
                v = jnp.where(not_last, v, 0.0)
            elif ox == -1:
                v = jnp.where(not_first, v, 0.0)
            logits = logits + v
    # conv2 bias omitted on purpose: it cancels in the softmax over H.

    # ---- per-column (over H) reductions on the flat row via circular rolls ----
    # A circular roll of the full H*W axis by a multiple of W maps (y, x) ->
    # ((y + k) mod H, x): it permutes rows within each column, so the roll
    # direction is irrelevant and no (H, W) relayout is needed.
    def _col_reduce(a, op):
        if H & (H - 1) == 0:                      # log2(H)-step tree
            sh = W
            while sh < HW:
                a = op(a, pltpu.roll(a, shift=sh, axis=1))
                sh *= 2
        else:                                     # generic fallback: H-1 rolls
            r = a
            for _ in range(H - 1):
                r = pltpu.roll(r, shift=W, axis=1)
                a = op(a, r)
        return a

    # softmax over H, numerically stabilized with the per-column max
    m = _col_reduce(logits, jnp.maximum)                      # (1, HW)
    e = jnp.exp(logits - m)
    denom = _col_reduce(e, jnp.add)                           # (1, HW)
    wgt = e * pl.reciprocal(denom, approx=True)               # softmax weights

    # ---- fused weighted H-reduction of depth (flat layout, no D loop) ----
    red = _col_reduce(depth_ref[...] * wgt, jnp.add)          # (D, HW)
    out_ref[...] = red[:, :W].astype(out_ref.dtype)           # column sums live at y=0


def _depth_reducer_pallas(patches, depth_flat, w1_f, bias, w2t, W):
    B, K9, HW = patches.shape
    _, D, _ = depth_flat.shape
    Cmid = w1_f.shape[0]
    # zero margin must cover the largest tap offset (W + 1); 128 keeps the
    # scratch store lane-aligned.
    pad = max(128, ((W + 1 + 127) // 128) * 128)

    return pl.pallas_call(
        _depth_reducer_kernel,
        out_shape=jax.ShapeDtypeStruct((B, D, W), depth_flat.dtype),
        grid_spec=pltpu.PrefetchScalarGridSpec(
            num_scalar_prefetch=0,
            grid=(B,),
            in_specs=[
                pl.BlockSpec((None, K9, HW), lambda b: (b, 0, 0)),
                pl.BlockSpec((None, D, HW), lambda b: (b, 0, 0)),
                pl.BlockSpec((Cmid, K9), lambda b: (0, 0)),
                pl.BlockSpec((Cmid, 1), lambda b: (0, 0)),
                pl.BlockSpec((9, Cmid), lambda b: (0, 0)),
            ],
            out_specs=pl.BlockSpec((None, D, W), lambda b: (b, 0, 0)),
            scratch_shapes=[
                pltpu.VMEM((9, HW + 2 * pad), jnp.float32),
            ],
        ),
        compiler_params=pltpu.CompilerParams(
            dimension_semantics=("parallel",)),
    )(patches, depth_flat, w1_f, bias, w2t)


@jax.jit
def depth_reducer_forward(feat, depth, w1, b1, gamma, beta, mean, var, w2, b2):
    """feat: (B, Cin, H, W) NCHW, depth: (B, D, H, W).  Returns (B, D, W)."""
    B, Cin, H, W = feat.shape
    _, D, _, _ = depth.shape
    Cmid = w1.shape[0]

    # -- fold BatchNorm (eval) into conv1: scale into the weights (f32 fold,
    #    then bf16 cast), shift + conv1 bias into a single per-channel f32 bias.
    scale = gamma / jnp.sqrt(var + _BN_EPS)                       # (Cmid,)
    w1_2d = jnp.transpose(w1, (0, 2, 3, 1)).reshape(Cmid, 9 * Cin)   # tap-major
    w1_f = (w1_2d * scale[:, None]).astype(jnp.bfloat16)
    bias = ((b1 - mean) * scale + beta).reshape(Cmid, 1).astype(jnp.float32)

    # -- conv2 weights -> (9, Cmid) so the channel reduce is an MXU matmul;
    #    conv2 bias is softmax-invariant over H -> dropped.
    w2t = jnp.transpose(w2.reshape(Cmid, 9)).astype(jnp.float32)
    del b2

    # -- im2col of feat -> (B, 9*Cin, H*W), pixels lane-dense, bf16 for the MXU.
    #    (At production Cin this could move in-kernel to avoid the 9x HBM read.)
    fp = jnp.pad(feat, ((0, 0), (0, 0), (1, 1), (1, 1)))
    cols = [fp[:, :, ky:ky + H, kx:kx + W].reshape(B, Cin, H * W)
            for ky in range(3) for kx in range(3)]
    patches = jnp.concatenate(cols, axis=1).astype(jnp.bfloat16)

    # -- depth stays flat: (B, D, H*W) is a free reshape (no transpose HBM pass);
    #    the strided H-reduction is handled in-kernel by the roll tree.
    depth_flat = depth.reshape(B, D, H * W).astype(jnp.float32)

    return _depth_reducer_pallas(patches, depth_flat, w1_f, bias, w2t, W)


def reference_jax(feat, depth, w1, b1, gamma, beta, mean, var, w2, b2,
                  eps=_BN_EPS):
    """Pure-JAX NCHW reference matching the PyTorch module (BN in eval mode)."""
    dn = ('NCHW', 'OIHW', 'NCHW')
    x = jax.lax.conv_general_dilated(feat, w1, (1, 1), 'SAME',
                                     dimension_numbers=dn,
                                     precision=jax.lax.Precision.HIGHEST)
    x = x + b1[None, :, None, None]
    x = (x - mean[None, :, None, None]) / jnp.sqrt(var[None, :, None, None] + eps)
    x = x * gamma[None, :, None, None] + beta[None, :, None, None]
    x = jnp.maximum(x, 0.0)
    x = jax.lax.conv_general_dilated(x, w2, (1, 1), 'SAME',
                                     dimension_numbers=dn,
                                     precision=jax.lax.Precision.HIGHEST)
    x = x + b2[None, :, None, None]
    wgt = jax.nn.softmax(x, axis=2)                     # softmax over H
    return (depth * wgt).sum(axis=2)                    # (B, D, W)


if __name__ == "__main__":
    # Small shapes: batch=2, img_channels=4, mid_channels=8, depth bins=4, H=W=16
    B, Cin, Cmid, D, H, W = 2, 4, 8, 4, 16, 16

    keys = jax.random.split(jax.random.PRNGKey(0), 10)
    w1 = jax.random.normal(keys[0], (Cmid, Cin, 3, 3), jnp.float32) * 0.1
    b1 = jax.random.normal(keys[1], (Cmid,), jnp.float32) * 0.1
    gamma = 1.0 + 0.1 * jax.random.normal(keys[2], (Cmid,), jnp.float32)
    beta = 0.1 * jax.random.normal(keys[3], (Cmid,), jnp.float32)
    run_mean = 0.1 * jax.random.normal(keys[4], (Cmid,), jnp.float32)
    run_var = jnp.abs(jax.random.normal(keys[5], (Cmid,), jnp.float32)) + 0.5
    w2 = jax.random.normal(keys[6], (1, Cmid, 3, 3), jnp.float32) * 0.1
    b2 = jax.random.normal(keys[7], (1,), jnp.float32) * 0.1

    feat = jax.random.normal(keys[8], (B, Cin, H, W), jnp.float32)        # NCHW
    depth = jax.nn.softmax(
        jax.random.normal(keys[9], (B, D, H, W), jnp.float32), axis=1)

    out = depth_reducer_forward(feat, depth, w1, b1, gamma, beta,
                                run_mean, run_var, w2, b2)
    out = jax.block_until_ready(out)

    ref = reference_jax(feat, depth, w1, b1, gamma, beta,
                        run_mean, run_var, w2, b2)
    ref = jax.block_until_ready(ref)

    assert out.shape == (B, D, W), out.shape
    max_err = float(jnp.abs(out - ref).max())
    # Tolerance accounts for bf16 MXU inputs on conv1 (f32 accumulate) and the
    # approximate reciprocal in the softmax normalization.
    assert jnp.allclose(out, ref, atol=1e-2, rtol=1e-2), max_err

    print("KERNEL_OK")
</pallas_src>

<mosaic_0001>
module attributes {stable_mosaic.version = 11 : i64} {
  func.func @_depth_reducer_kernel(%arg0: i32, %arg1: memref<1x36x256xbf16, #tpu.memory_space<vmem>>, %arg2: memref<1x4x256xf32, #tpu.memory_space<vmem>>, %arg3: memref<8x36xbf16, #tpu.memory_space<vmem>>, %arg4: memref<8x1xf32, #tpu.memory_space<vmem>>, %arg5: memref<9x8xf32, #tpu.memory_space<vmem>>, %arg6: memref<1x4x16xf32, #tpu.memory_space<vmem>>, %arg7: memref<9x512xf32, #tpu.memory_space<vmem>>) attributes {dimension_semantics = [#tpu.dimension_semantics<parallel>], iteration_bounds = array<i64: 2>, scalar_prefetch = 0 : i64, scratch_operands = 1 : i64, tpu.core_type = #tpu.core_type<tc>, window_params = [{transform_indices = @transform_0, window_bounds = array<i64: 1, 36, 256>}, {transform_indices = @transform_1, window_bounds = array<i64: 1, 4, 256>}, {pipeline_mode = #tpu.pipeline_mode<synchronous>, transform_indices = @transform_2, window_bounds = array<i64: 8, 36>}, {pipeline_mode = #tpu.pipeline_mode<synchronous>, transform_indices = @transform_3, window_bounds = array<i64: 8, 1>}, {pipeline_mode = #tpu.pipeline_mode<synchronous>, transform_indices = @transform_4, window_bounds = array<i64: 9, 8>}, {transform_indices = @transform_5, window_bounds = array<i64: 1, 4, 16>}]} {
    %c0 = arith.constant 0 : index
    %c0_0 = arith.constant 0 : index
    %0 = vector.load %arg3[%c0, %c0_0] : memref<8x36xbf16, #tpu.memory_space<vmem>>, vector<8x36xbf16>
    %c0_1 = arith.constant 0 : index
    %c0_2 = arith.constant 0 : index
    %c0_3 = arith.constant 0 : index
    %1 = vector.load %arg1[%c0_1, %c0_2, %c0_3] : memref<1x36x256xbf16, #tpu.memory_space<vmem>>, vector<1x36x256xbf16>
    %2 = vector.shape_cast %1 : vector<1x36x256xbf16> to vector<36x256xbf16>
    %cst = arith.constant dense<0.000000e+00> : vector<8x256xf32>
    %3 = tpu.matmul %0, %2, %cst {dimension_numbers = #tpu.dot_dimension_numbers<[1], [0], [0], [1], [0, 0, 1, 1], [], []>} : vector<8x36xbf16>, vector<36x256xbf16>, vector<8x256xf32> -> vector<8x256xf32>
    %c0_4 = arith.constant 0 : index
    %c0_5 = arith.constant 0 : index
    %4 = vector.load %arg4[%c0_4, %c0_5] : memref<8x1xf32, #tpu.memory_space<vmem>>, vector<8x1xf32>
    %5 = vector.broadcast %4 : vector<8x1xf32> to vector<8x256xf32>
    %6 = arith.addf %3, %5 : vector<8x256xf32>
    %cst_6 = arith.constant 0.000000e+00 : f32
    %7 = vector.broadcast %cst_6 : f32 to vector<8x256xf32>
    %8 = arith.maximumf %6, %7 : vector<8x256xf32>
    %c0_7 = arith.constant 0 : index
    %c0_8 = arith.constant 0 : index
    %9 = vector.load %arg5[%c0_7, %c0_8] : memref<9x8xf32, #tpu.memory_space<vmem>>, vector<9x8xf32>
    %cst_9 = arith.constant dense<0.000000e+00> : vector<9x256xf32>
    %10 = tpu.matmul %9, %8, %cst_9 {dimension_numbers = #tpu.dot_dimension_numbers<[1], [0], [0], [1], [0, 0, 1, 1], [], []>} : vector<9x8xf32>, vector<8x256xf32>, vector<9x256xf32> -> vector<9x256xf32>
    %cst_10 = arith.constant 0.000000e+00 : f32
    %11 = vector.broadcast %cst_10 : f32 to vector<9x512xf32>
    %c0_11 = arith.constant 0 : index
    %c0_12 = arith.constant 0 : index
    %12 = vector.load %arg7[%c0_11, %c0_12] : memref<9x512xf32, #tpu.memory_space<vmem>>, vector<9x512xf32>
    tpu.vector_store %arg7[%c0_11, %c0_12], %11 {strides = array<i32>} : memref<9x512xf32, #tpu.memory_space<vmem>>, vector<9x512xf32>,
    %c0_13 = arith.constant 0 : index
    %c128 = arith.constant 128 : index
    %13 = vector.load %arg7[%c0_13, %c128] : memref<9x512xf32, #tpu.memory_space<vmem>>, vector<9x256xf32>
    tpu.vector_store %arg7[%c0_13, %c128], %10 {strides = array<i32>} : memref<9x512xf32, #tpu.memory_space<vmem>>, vector<9x256xf32>,
    %14 = tpu.iota {dimensions = array<i32: 1>} : vector<1x256xi32>
    %c16_i32 = arith.constant 16 : i32
    %c0_i32 = arith.constant 0 : i32
    %15 = arith.cmpi eq, %c16_i32, %c0_i32 : i32
    %c1_i32 = arith.constant 1 : i32
    %16 = arith.select %15, %c1_i32, %c16_i32 : i32
    %17 = vector.broadcast %16 : i32 to vector<1x256xi32>
    %18 = arith.remsi %14, %17 : vector<1x256xi32>
    %c0_i32_14 = arith.constant 0 : i32
    %19 = vector.broadcast %c0_i32_14 : i32 to vector<1x256xi32>
    %20 = arith.cmpi ne, %18, %19 : vector<1x256xi32>
    %c0_i32_15 = arith.constant 0 : i32
    %21 = vector.broadcast %c0_i32_15 : i32 to vector<1x256xi32>
    %22 = arith.cmpi slt, %18, %21 : vector<1x256xi32>
    %c0_i32_16 = arith.constant 0 : i32
    %23 = arith.cmpi slt, %16, %c0_i32_16 : i32
    %24 = vector.broadcast %23 : i1 to vector<1x256xi1>
    %25 = vector.broadcast %24 : vector<1x256xi1> to vector<1x256xi1>
    %26 = arith.xori %22, %25 : vector<1x256xi1>
    %27 = arith.andi %26, %20 : vector<1x256xi1>
    %28 = vector.broadcast %16 : i32 to vector<1x256xi32>
    %29 = arith.addi %18, %28 : vector<1x256xi32>
    %30 = arith.select %27, %29, %18 : vector<1x256xi1>, vector<1x256xi32>
    %c15_i32 = arith.constant 15 : i32
    %31 = vector.broadcast %c15_i32 : i32 to vector<1x256xi32>
    %32 = arith.cmpi slt, %30, %31 : vector<1x256xi32>
    %c0_i32_17 = arith.constant 0 : i32
    %33 = vector.broadcast %c0_i32_17 : i32 to vector<1x256xi32>
    %34 = arith.cmpi sgt, %30, %33 : vector<1x256xi32>
    %35 = vector.extract_strided_slice %10 {offsets = [4, 0], sizes = [1, 256], strides = [1, 1]} : vector<9x256xf32> to vector<1x256xf32>
    %c0_18 = arith.constant 0 : index
    %c111 = arith.constant 111 : index
    %36 = vector.load %arg7[%c0_18, %c111] : memref<9x512xf32, #tpu.memory_space<vmem>>, vector<1x256xf32>
    %cst_19 = arith.constant 0.000000e+00 : f32
    %37 = vector.broadcast %cst_19 : f32 to vector<1x256xf32>
    %38 = arith.select %34, %36, %37 : vector<1x256xi1>, vector<1x256xf32>
    %39 = arith.addf %35, %38 : vector<1x256xf32>
    %c1 = arith.constant 1 : index
    %c112 = arith.constant 112 : index
    %40 = vector.load %arg7[%c1, %c112] : memref<9x512xf32, #tpu.memory_space<vmem>>, vector<1x256xf32>
    %41 = arith.addf %39, %40 : vector<1x256xf32>
    %c2 = arith.constant 2 : index
    %c113 = arith.constant 113 : index
    %42 = vector.load %arg7[%c2, %c113] : memref<9x512xf32, #tpu.memory_space<vmem>>, vector<1x256xf32>
    %cst_20 = arith.constant 0.000000e+00 : f32
    %43 = vector.broadcast %cst_20 : f32 to vector<1x256xf32>
    %44 = arith.select %32, %42, %43 : vector<1x256xi1>, vector<1x256xf32>
    %45 = arith.addf %41, %44 : vector<1x256xf32>
    %c3 = arith.constant 3 : index
    %c127 = arith.constant 127 : index
    %46 = vector.load %arg7[%c3, %c127] : memref<9x512xf32, #tpu.memory_space<vmem>>, vector<1x256xf32>
    %cst_21 = arith.constant 0.000000e+00 : f32
    %47 = vector.broadcast %cst_21 : f32 to vector<1x256xf32>
    %48 = arith.select %34, %46, %47 : vector<1x256xi1>, vector<1x256xf32>
    %49 = arith.addf %45, %48 : vector<1x256xf32>
    %c5 = arith.constant 5 : index
    %c129 = arith.constant 129 : index
    %50 = vector.load %arg7[%c5, %c129] : memref<9x512xf32, #tpu.memory_space<vmem>>, vector<1x256xf32>
    %cst_22 = arith.constant 0.000000e+00 : f32
    %51 = vector.broadcast %cst_22 : f32 to vector<1x256xf32>
    %52 = arith.select %32, %50, %51 : vector<1x256xi1>, vector<1x256xf32>
    %53 = arith.addf %49, %52 : vector<1x256xf32>
    %c6 = arith.constant 6 : index
    %c143 = arith.constant 143 : index
    %54 = vector.load %arg7[%c6, %c143] : memref<9x512xf32, #tpu.memory_space<vmem>>, vector<1x256xf32>
    %cst_23 = arith.constant 0.000000e+00 : f32
    %55 = vector.broadcast %cst_23 : f32 to vector<1x256xf32>
    %56 = arith.select %34, %54, %55 : vector<1x256xi1>, vector<1x256xf32>
    %57 = arith.addf %53, %56 : vector<1x256xf32>
    %c7 = arith.constant 7 : index
    %c144 = arith.constant 144 : index
    %58 = vector.load %arg7[%c7, %c144] : memref<9x512xf32, #tpu.memory_space<vmem>>, vector<1x256xf32>
    %59 = arith.addf %57, %58 : vector<1x256xf32>
    %c8 = arith.constant 8 : index
    %c145 = arith.constant 145 : index
    %60 = vector.load %arg7[%c8, %c145] : memref<9x512xf32, #tpu.memory_space<vmem>>, vector<1x256xf32>
    %cst_24 = arith.constant 0.000000e+00 : f32
    %61 = vector.broadcast %cst_24 : f32 to vector<1x256xf32>
    %62 = arith.select %32, %60, %61 : vector<1x256xi1>, vector<1x256xf32>
    %63 = arith.addf %59, %62 : vector<1x256xf32>
    %c16_i32_25 = arith.constant 16 : i32
    %64 = tpu.dynamic_rotate %63 by %c16_i32_25 dim 1 : vector<1x256xf32>, i32 -> vector<1x256xf32>
    %65 = arith.maximumf %63, %64 : vector<1x256xf32>
    %c32_i32 = arith.constant 32 : i32
    %66 = tpu.dynamic_rotate %65 by %c32_i32 dim 1 : vector<1x256xf32>, i32 -> vector<1x256xf32>
    %67 = arith.maximumf %65, %66 : vector<1x256xf32>
    %c64_i32 = arith.constant 64 : i32
    %68 = tpu.dynamic_rotate %67 by %c64_i32 dim 1 : vector<1x256xf32>, i32 -> vector<1x256xf32>
    %69 = arith.maximumf %67, %68 : vector<1x256xf32>
    %c128_i32 = arith.constant 128 : i32
    %70 = tpu.dynamic_rotate %69 by %c128_i32 dim 1 : vector<1x256xf32>, i32 -> vector<1x256xf32>
    %71 = arith.maximumf %69, %70 : vector<1x256xf32>
    %72 = arith.subf %63, %71 : vector<1x256xf32>
    %73 = math.exp %72 : vector<1x256xf32>
    %c16_i32_26 = arith.constant 16 : i32
    %74 = tpu.dynamic_rotate %73 by %c16_i32_26 dim 1 : vector<1x256xf32>, i32 -> vector<1x256xf32>
    %75 = arith.addf %73, %74 : vector<1x256xf32>
    %c32_i32_27 = arith.constant 32 : i32
    %76 = tpu.dynamic_rotate %75 by %c32_i32_27 dim 1 : vector<1x256xf32>, i32 -> vector<1x256xf32>
    %77 = arith.addf %75, %76 : vector<1x256xf32>
    %c64_i32_28 = arith.constant 64 : i32
    %78 = tpu.dynamic_rotate %77 by %c64_i32_28 dim 1 : vector<1x256xf32>, i32 -> vector<1x256xf32>
    %79 = arith.addf %77, %78 : vector<1x256xf32>
    %c128_i32_29 = arith.constant 128 : i32
    %80 = tpu.dynamic_rotate %79 by %c128_i32_29 dim 1 : vector<1x256xf32>, i32 -> vector<1x256xf32>
    %81 = arith.addf %79, %80 : vector<1x256xf32>
    %82 = tpu.reciprocal %81 {approx = true} : vector<1x256xf32> -> vector<1x256xf32>
    %83 = arith.mulf %73, %82 : vector<1x256xf32>
    %c0_30 = arith.constant 0 : index
    %c0_31 = arith.constant 0 : index
    %c0_32 = arith.constant 0 : index
    %84 = vector.load %arg2[%c0_30, %c0_31, %c0_32] : memref<1x4x256xf32, #tpu.memory_space<vmem>>, vector<1x4x256xf32>
    %85 = vector.shape_cast %84 : vector<1x4x256xf32> to vector<4x256xf32>
    %86 = vector.broadcast %83 : vector<1x256xf32> to vector<4x256xf32>
    %87 = arith.mulf %85, %86 : vector<4x256xf32>
    %c16_i32_33 = arith.constant 16 : i32
    %88 = tpu.dynamic_rotate %87 by %c16_i32_33 dim 1 : vector<4x256xf32>, i32 -> vector<4x256xf32>
    %89 = arith.addf %87, %88 : vector<4x256xf32>
    %c32_i32_34 = arith.constant 32 : i32
    %90 = tpu.dynamic_rotate %89 by %c32_i32_34 dim 1 : vector<4x256xf32>, i32 -> vector<4x256xf32>
    %91 = arith.addf %89, %90 : vector<4x256xf32>
    %c64_i32_35 = arith.constant 64 : i32
    %92 = tpu.dynamic_rotate %91 by %c64_i32_35 dim 1 : vector<4x256xf32>, i32 -> vector<4x256xf32>
    %93 = arith.addf %91, %92 : vector<4x256xf32>
    %c128_i32_36 = arith.constant 128 : i32
    %94 = tpu.dynamic_rotate %93 by %c128_i32_36 dim 1 : vector<4x256xf32>, i32 -> vector<4x256xf32>
    %95 = arith.addf %93, %94 : vector<4x256xf32>
    %96 = vector.extract_strided_slice %95 {offsets = [0, 0], sizes = [4, 16], strides = [1, 1]} : vector<4x256xf32> to vector<4x16xf32>
    %c0_37 = arith.constant 0 : index
    %c0_38 = arith.constant 0 : index
    %c0_39 = arith.constant 0 : index
    %97 = vector.load %arg6[%c0_37, %c0_38, %c0_39] : memref<1x4x16xf32, #tpu.memory_space<vmem>>, vector<1x4x16xf32>
    %98 = vector.shape_cast %97 : vector<1x4x16xf32> to vector<4x16xf32>
    %99 = vector.shape_cast %96 : vector<4x16xf32> to vector<1x4x16xf32>
    tpu.vector_store %arg6[%c0_37, %c0_38, %c0_39], %99 {strides = array<i32>} : memref<1x4x16xf32, #tpu.memory_space<vmem>>, vector<1x4x16xf32>,
    return
  }
  func.func @transform_0(%arg0: i32) -> (i32, i32, i32) {
    %c0_i32 = arith.constant 0 : i32
    %c0_i32_0 = arith.constant 0 : i32
    %c0_i32_1 = arith.constant 0 : i32
    return %arg0, %c0_i32, %c0_i32_0 : i32, i32, i32
  }
  func.func @transform_1(%arg0: i32) -> (i32, i32, i32) {
    %c0_i32 = arith.constant 0 : i32
    %c0_i32_0 = arith.constant 0 : i32
    %c0_i32_1 = arith.constant 0 : i32
    return %arg0, %c0_i32, %c0_i32_0 : i32, i32, i32
  }
  func.func @transform_2(%arg0: i32) -> (i32, i32) {
    %c0_i32 = arith.constant 0 : i32
    %c0_i32_0 = arith.constant 0 : i32
    %c0_i32_1 = arith.constant 0 : i32
    return %c0_i32, %c0_i32_0 : i32, i32
  }
  func.func @transform_3(%arg0: i32) -> (i32, i32) {
    %c0_i32 = arith.constant 0 : i32
    %c0_i32_0 = arith.constant 0 : i32
    %c0_i32_1 = arith.constant 0 : i32
    return %c0_i32, %c0_i32_0 : i32, i32
  }
  func.func @transform_4(%arg0: i32) -> (i32, i32) {
    %c0_i32 = arith.constant 0 : i32
    %c0_i32_0 = arith.constant 0 : i32
    %c0_i32_1 = arith.constant 0 : i32
    return %c0_i32, %c0_i32_0 : i32, i32
  }
  func.func @transform_5(%arg0: i32) -> (i32, i32, i32) {
    %c0_i32 = arith.constant 0 : i32
    %c0_i32_0 = arith.constant 0 : i32
    %c0_i32_1 = arith.constant 0 : i32
    return %arg0, %c0_i32, %c0_i32_0 : i32, i32, i32
  }
}

</mosaic_0001>

<llo_original>
// kernel: depth_reducer_forward.1
$region0: #{depth_reducer_forward.1}
  #allocation0 [shape = 'u32[]', space=smem, size = 0x4, offset = 0x4, fixed_abs, tag = 'smem constant byte address 0x4 - core index']
  #allocation1 [shape = 'u32[144,128]{1,0:T(1,128)}', space=vmem, size = 0x12000, scoped, tag = 'internal scratch']
  #allocation2 [shape = 'f32[9,512]{1,0:T(8,128)}', space=vmem, size = 0x8000, scoped, tag = 'scratch operand']
  %s0 = inlined_call_operand.vmem [shape: bf16[2,36,256], index: 0, kind: input, shape index: {}]
  %s1 = inlined_call_operand.vmem [shape: f32[2,4,256], index: 1, kind: input, shape index: {}]
  %s2 = inlined_call_operand.vmem [shape: bf16[8,36], index: 2, kind: input, shape index: {}]
  %s3 = inlined_call_operand.vmem [shape: f32[8,1], index: 3, kind: input, shape index: {}]
  %s4 = inlined_call_operand.vmem [shape: f32[9,8], index: 4, kind: input, shape index: {}]
  %s5 = inlined_call_operand.hbm [shape: f32[2,4,16], index: 5, kind: output, shape index: {}]
  %s6 = sld [smem:[#allocation0]]
  $region53: #{depth_reducer_forward.1} parent=0
    _
  %s8 = ssub.s32 1, %s6
  %s9 = scalar_select 0, %s8, %s6
  $region1: #{depth_reducer_forward.1} parent=0
    #allocation3 [shape = 'u8[4096]{0}', space=vmem, size = 0x1000, scoped, tag = 'output window, operand 0']
    #allocation4 [shape = 's32[2]{0}', space=sflag, size = 0x8, scoped, tag = 'scoped memory for depth_reducer_forward.1']
    %10 = vsyncpa [#allocation4], 0
    %s11 = scalar_lea.sflag [#allocation4], 1
    %12 = vsyncpa %s11, 0
    loop: start=0, step=1, limit=4
    $region2: #{depth_reducer_forward.1} parent=1 // loop_pre_header
      _
    $region3: #{depth_reducer_forward.1} parent=1 // loop_header
      %s14 = sphi 0, %s18
      %p15 = scmp.ge.s32.totalorder %s14, 4
      %s24 = sphi 0, %s26
      %s27 = sphi 0, %s24
      %s28 = sphi 0, %s27
      %s44 = sphi 0, %s28
      %s50 = sphi 0, %s52
      %s53 = sphi 0, %s50
      %s54 = sphi 0, %s53
      %s70 = sphi 0, %s54
      %s74 = sphi 0, %s74
      %s76 = sphi 0, %s74
      %s77 = sphi 0, %s76
      %s91 = sphi 0, %s77
      %s95 = sphi 0, %s95
      %s97 = sphi 0, %s95
      %s98 = sphi 0, %s97
      %s112 = sphi 0, %s98
      %s116 = sphi 0, %s116
      %s118 = sphi 0, %s116
      %s119 = sphi 0, %s118
      %s133 = sphi 0, %s119
      %s139 = sphi 0, %s141
      %s142 = sphi 0, %s139
      %s143 = sphi 0, %s142
      %s159 = sphi 0, %s143
    $region4: #{depth_reducer_forward.1} parent=1 // loop_header_branch
      %17 = sbr.rel (%p15) target = $region8
    $region5: #{depth_reducer_forward.1} parent=1 // loop_body
      %s19 = ssub.s32 %s14, 1
      %s20 = ssub.s32 %s14, 2
      %s21 = sadd.s32 %s14, 1
      %s22 = ssub.s32 %s14, %s21
      %p23 = scmp.eq.s32.totalorder %s22, 0
      %s25 = sadd.s32 %s24, 1
      %s26 = scalar_select %p23, %s24, %s25
      %p29 = pneg %p23
      %p30 = scmp.eq.s32.totalorder %s14, 1
      %p31 = por %p29, %p30
      %p32 = scmp.ne.s32.totalorder %s24, %s27
      %p33 = scmp.eq.s32.totalorder %s14, 0
      %p34 = por %p32, %p33
      %p35 = scmp.ne.s32.totalorder %s24, %s27
      %p36 = scmp.eq.s32.totalorder %s19, 1
      %p37 = por %p35, %p36
      %p38 = scmp.ne.s32.totalorder %s27, %s28
      %p39 = scmp.eq.s32.totalorder %s19, 0
      %p40 = por %p38, %p39
      %p41 = scmp.ne.s32.totalorder %s27, %s28
      %p42 = scmp.eq.s32.totalorder %s20, 1
      %p43 = por %p41, %p42
      %p45 = scmp.ne.s32.totalorder %s28, %s44
      %p46 = scmp.eq.s32.totalorder %s20, 0
      %p47 = por %p45, %p46
      %s48 = ssub.s32 %s14, %s21
      %p49 = scmp.eq.s32.totalorder %s48, 0
      %s51 = sadd.s32 %s50, 1
      %s52 = scalar_select %p49, %s50, %s51
      %p55 = pneg %p49
      %p56 = scmp.eq.s32.totalorder %s14, 1
      %p57 = por %p55, %p56
      %p58 = scmp.ne.s32.totalorder %s50, %s53
      %p59 = scmp.eq.s32.totalorder %s14, 0
      %p60 = por %p58, %p59
      %p61 = scmp.ne.s32.totalorder %s50, %s53
      %p62 = scmp.eq.s32.totalorder %s19, 1
      %p63 = por %p61, %p62
      %p64 = scmp.ne.s32.totalorder %s53, %s54
      %p65 = scmp.eq.s32.totalorder %s19, 0
      %p66 = por %p64, %p65
      %p67 = scmp.ne.s32.totalorder %s53, %s54
      %p68 = scmp.eq.s32.totalorder %s20, 1
      %p69 = por %p67, %p68
      %p71 = scmp.ne.s32.totalorder %s54, %s70
      %p72 = scmp.eq.s32.totalorder %s20, 0
      %p73 = por %p71, %p72
      %s75 = sadd.s32 %s74, 1
      %p78 = scmp.eq.s32.totalorder %s14, 1
      %p79 = scmp.ne.s32.totalorder %s74, %s76
      %p80 = scmp.eq.s32.totalorder %s14, 0
      %p81 = por %p79, %p80
      %p82 = scmp.ne.s32.totalorder %s74, %s76
      %p83 = scmp.eq.s32.totalorder %s19, 1
      %p84 = por %p82, %p83
      %p85 = scmp.ne.s32.totalorder %s76, %s77
      %p86 = scmp.eq.s32.totalorder %s19, 0
      %p87 = por %p85, %p86
      %p88 = scmp.ne.s32.totalorder %s76, %s77
      %p89 = scmp.eq.s32.totalorder %s20, 1
      %p90 = por %p88, %p89
      %p92 = scmp.ne.s32.totalorder %s77, %s91
      %p93 = scmp.eq.s32.totalorder %s20, 0
      %p94 = por %p92, %p93
      %s96 = sadd.s32 %s95, 1
      %p99 = scmp.eq.s32.totalorder %s14, 1
      %p100 = scmp.ne.s32.totalorder %s95, %s97
      %p101 = scmp.eq.s32.totalorder %s14, 0
      %p102 = por %p100, %p101
      %p103 = scmp.ne.s32.totalorder %s95, %s97
      %p104 = scmp.eq.s32.totalorder %s19, 1
      %p105 = por %p103, %p104
      %p106 = scmp.ne.s32.totalorder %s97, %s98
      %p107 = scmp.eq.s32.totalorder %s19, 0
      %p108 = por %p106, %p107
      %p109 = scmp.ne.s32.totalorder %s97, %s98
      %p110 = scmp.eq.s32.totalorder %s20, 1
      %p111 = por %p109, %p110
      %p113 = scmp.ne.s32.totalorder %s98, %s112
      %p114 = scmp.eq.s32.totalorder %s20, 0
      %p115 = por %p113, %p114
      %s117 = sadd.s32 %s116, 1
      %p120 = scmp.eq.s32.totalorder %s14, 1
      %p121 = scmp.ne.s32.totalorder %s116, %s118
      %p122 = scmp.eq.s32.totalorder %s14, 0
      %p123 = por %p121, %p122
      %p124 = scmp.ne.s32.totalorder %s116, %s118
      %p125 = scmp.eq.s32.totalorder %s19, 1
      %p126 = por %p124, %p125
      %p127 = scmp.ne.s32.totalorder %s118, %s119
      %p128 = scmp.eq.s32.totalorder %s19, 0
      %p129 = por %p127, %p128
      %p130 = scmp.ne.s32.totalorder %s118, %s119
      %p131 = scmp.eq.s32.totalorder %s20, 1
      %p132 = por %p130, %p131
      %p134 = scmp.ne.s32.totalorder %s119, %s133
      %p135 = scmp.eq.s32.totalorder %s20, 0
      %p136 = por %p134, %p135
      %s137 = ssub.s32 %s14, %s21
      %p138 = scmp.eq.s32.totalorder %s137, 0
      %s140 = sadd.s32 %s139, 1
      %s141 = scalar_select %p138, %s139, %s140
      %p144 = pneg %p138
      %p145 = scmp.eq.s32.totalorder %s14, 1
      %p146 = por %p144, %p145
      %p147 = scmp.ne.s32.totalorder %s139, %s142
      %p148 = scmp.eq.s32.totalorder %s14, 0
      %p149 = por %p147, %p148
      %p150 = scmp.ne.s32.totalorder %s139, %s142
      %p151 = scmp.eq.s32.totalorder %s19, 1
      %p152 = por %p150, %p151
      %p153 = scmp.ne.s32.totalorder %s142, %s143
      %p154 = scmp.eq.s32.totalorder %s19, 0
      %p155 = por %p153, %p154
      %p156 = scmp.ne.s32.totalorder %s142, %s143
      %p157 = scmp.eq.s32.totalorder %s20, 1
      %p158 = por %p156, %p157
      %p160 = scmp.ne.s32.totalorder %s143, %s159
      %p161 = scmp.eq.s32.totalorder %s20, 0
      %p162 = por %p160, %p161
      %p163 = scmp.le.s32.totalorder 1, %s14
      %p164 = scmp.lt.s32.totalorder %s14, 3
      %p165 = pnand %p163, %p164
      %p166 = pneg %p165
      // Predicated region
      $region9: #{depth_reducer_forward.1} parent=5 // pred_check
        _
      $region10: #{depth_reducer_forward.1} parent=5 // pred_check_branch
        %168 = sbr.rel (%p165) target = $region12
      $region11: #{depth_reducer_forward.1} parent=5 // pred_region
        %s169 = ssub.s32 %s14, 1
        // Predicated region
        $region13: #{depth_reducer_forward.1} parent=11 // pred_check
          %p170 = pneg %p87
        $region14: #{depth_reducer_forward.1} parent=11 // pred_check_branch
          %172 = sbr.rel (%p170) target = $region16
        $region15: #{depth_reducer_forward.1} parent=11 // pred_region
          _
        $region16: #{depth_reducer_forward.1} parent=11 // pred_fallthru
          _
        // Predicated region
        $region17: #{depth_reducer_forward.1} parent=11 // pred_check
          %p173 = pneg %p108
        $region18: #{depth_reducer_forward.1} parent=11 // pred_check_branch
          %175 = sbr.rel (%p173) target = $region20
        $region19: #{depth_reducer_forward.1} parent=11 // pred_region
          _
        $region20: #{depth_reducer_forward.1} parent=11 // pred_fallthru
          _
        // Predicated region
        $region21: #{depth_reducer_forward.1} parent=11 // pred_check
          %p176 = pneg %p129
        $region22: #{depth_reducer_forward.1} parent=11 // pred_check_branch
          %178 = sbr.rel (%p176) target = $region24
        $region23: #{depth_reducer_forward.1} parent=11 // pred_region
          _
        $region24: #{depth_reducer_forward.1} parent=11 // pred_fallthru
          _
      $region12: #{depth_reducer_forward.1} parent=5 // pred_fallthru
        _
      %p179 = scmp.lt.s32.totalorder %s14, 2
      // Predicated region
      $region25: #{depth_reducer_forward.1} parent=5 // pred_check
        %p180 = pneg %p179
      $region26: #{depth_reducer_forward.1} parent=5 // pred_check_branch
        %182 = sbr.rel (%p180) target = $region28
      $region27: #{depth_reducer_forward.1} parent=5 // pred_region
        // Predicated region
        $region29: #{depth_reducer_forward.1} parent=27 // pred_check
          %p183 = pneg %p34
        $region30: #{depth_reducer_forward.1} parent=27 // pred_check_branch
          %185 = sbr.rel (%p183) target = $region32
        $region31: #{depth_reducer_forward.1} parent=27 // pred_region
          %p186 = scmp.lt.s32.totalorder %s14, 1
          %s187 = scalar_select %p186, %s14, 1
          %s188 = smul.addr %s187, 10
          %s189 = smul.addr %s188, 4
          %s190 = scalar_lea.vmem %s0, %s189
        $region32: #{depth_reducer_forward.1} parent=27 // pred_fallthru
          _
        // Predicated region
        $region33: #{depth_reducer_forward.1} parent=27 // pred_check
          %p191 = pneg %p60
        $region34: #{depth_reducer_forward.1} parent=27 // pred_check_branch
          %193 = sbr.rel (%p191) target = $region36
        $region35: #{depth_reducer_forward.1} parent=27 // pred_region
          %p194 = scmp.lt.s32.totalorder %s14, 1
          %s195 = scalar_select %p194, %s14, 1
          %s196 = smul.addr %s195, 2
          %s197 = smul.addr %s196, 4
          %s198 = scalar_lea.vmem %s1, %s197
        $region36: #{depth_reducer_forward.1} parent=27 // pred_fallthru
          _
      $region28: #{depth_reducer_forward.1} parent=5 // pred_fallthru
        _
      %p199 = scmp.le.s32.totalorder 1, %s14
      %p200 = scmp.lt.s32.totalorder %s14, 3
      %p201 = pnand %p199, %p200
      %p202 = pneg %p201
      // Predicated region
      $region37: #{depth_reducer_forward.1} parent=5 // pred_check
        _
      $region38: #{depth_reducer_forward.1} parent=5 // pred_check_branch
        %204 = sbr.rel (%p201) target = $region40
      $region39: #{depth_reducer_forward.1} parent=5 // pred_region
        %s205 = ssub.s32 %s14, 1
        %p206 = scmp.lt.s32.totalorder %s19, 1
        %s207 = scalar_select %p206, %s19, 1
        %s208 = smul.addr %s207, 10
        %s209 = smul.addr %s208, 4
        %s210 = scalar_lea.vmem %s0, %s209
        %p211 = pneg %p40
        %p212 = pneg %p37
        %p213 = scmp.lt.s32.totalorder %s19, 1
        %s214 = scalar_select %p213, %s19, 1
        %s215 = smul.addr %s214, 2
        %s216 = smul.addr %s215, 4
        %s217 = scalar_lea.vmem %s1, %s216
        %p218 = pneg %p66
        %p219 = pneg %p63
        %p220 = pneg %p87
        %p221 = pneg %p84
        %p222 = pneg %p108
        %p223 = pneg %p105
        %p224 = pneg %p129
        %p225 = pneg %p126
        %p226 = pneg %p155
        %p227 = pneg %p152
        %s228 = sand.u32 %s142, 1
        %s229 = scalar_lea.sflag [#allocation4], %s228
        %s230 = sand.u32 %s142, 1
        %s231 = smul.addr %s230, 4
        %s232 = scalar_lea.vmem [#allocation3], %s231
        %p233 = scmp.lt.s32.totalorder %s19, 1
        %s234 = scalar_select %p233, %s19, 1
        %s235 = smul.addr %s234, 10
        %s236 = smul.addr %s235, 4
        %s237 = scalar_lea.vmem %s0, %s236
        %p238 = scmp.lt.s32.totalorder %s19, 1
        %s239 = scalar_select %p238, %s19, 1
        %s240 = smul.addr %s239, 2
        %s241 = smul.addr %s240, 4
        %s242 = scalar_lea.vmem %s1, %s241
        %v244 = vld [vmem:[%s2] sm:$0xf]
        %v245 = vld [vmem:[%s237] sm:$0xff]
        %v246 = vld [vmem:[%s237 + $0x8] sm:$0xff]
        %v247 = vld [vmem:[%s237 + $0x10] sm:$0xff]
        %v248 = vld [vmem:[%s237 + $0x18] sm:$0xff]
        %v249 = vld [vmem:[%s237 + $0x20] sm:$0x33]
        %v250 = vld [vmem:[%s3] sm:$0xff]
        %252 = vset.pattern.permute.xlu0 0
        %253 = vperm.xlu0 %252, %v250
        %v254 = vpop.permute.xlu0 %253
        %v261 = vunpack.c.l.b16 %v245
        %v262 = vunpack.c.h.b16 %v245
        %v263 = vunpack.c.l.b16 %v246
        %v264 = vunpack.c.h.b16 %v246
        %v265 = vunpack.c.l.b16 %v247
        %v266 = vunpack.c.h.b16 %v247
        %v267 = vunpack.c.l.b16 %v248
        %v268 = vunpack.c.h.b16 %v248
        %v269 = vunpack.c.l.b16 %v249
        %v270 = vunpack.c.h.b16 %v249
        %v271 = vpack.c.b16 %v263, %v261
        %v272 = vpack.c.b16 %v264, %v262
        %v273 = vpack.c.b16 %v267, %v265
        %v274 = vpack.c.b16 %v268, %v266
        %v275 = vpack.c.b16 %v269, %v269
        %v276 = vpack.c.b16 %v270, %v270
        %vm281 = vcmask 293888
        %v283 = vsel %vm281, %v244, 0
        %vm285 = vcmask 1041408
        %v287 = vsel %vm285, %v275, 0
        %v290 = vsel %vm285, %v276, 0
        %292 = vmatprep.subr.bf16.mxu0 %v272
        %293 = vmatpush1.bf16.msra.mxu0 %v271
        %294 = vmatprep.subr.bf16.mxu0 %v274
        %295 = vmatpush1.bf16.msra.mxu0 %v273
        %296 = vmatprep.subr.bf16.mxu0 %v290
        %297 = vmatpush1.bf16.msra.mxu0 %v287
        %298 = vmatprep.subr.bf16.mxu0 0
        %299 = vmatpush1.bf16.msra.mxu0 0
        %300 = vmatprep.subr.bf16.mxu0 0
        %301 = vmatpush1.bf16.msra.mxu0 0
        %302 = vmatprep.subr.bf16.mxu0 0
        %303 = vmatpush1.bf16.msra.mxu0 0
        %304 = vmatprep.subr.bf16.mxu0 0
        %305 = vmatpush1.bf16.msra.mxu0 0
        %306 = vmatprep.subr.bf16.mxu0 0
        %307 = vmatpush1.bf16.msra.mxu0 0
        %308 = vmatprep.subr.bf16.mxu0 0
        %309 = vmatpush1.bf16.msra.mxu0 0
        %310 = vmatprep.subr.bf16.mxu0 0
        %311 = vmatpush1.bf16.msra.mxu0 0
        %312 = vmatprep.subr.bf16.mxu0 0
        %313 = vmatpush1.bf16.msra.mxu0 0
        %314 = vmatprep.subr.bf16.mxu0 0
        %315 = vmatpush1.bf16.msra.mxu0 0
        %316 = vmatprep.subr.bf16.mxu0 0
        %317 = vmatpush1.bf16.msra.mxu0 0
        %318 = vmatprep.subr.bf16.mxu0 0
        %319 = vmatpush1.bf16.msra.mxu0 0
        %320 = vmatprep.subr.bf16.mxu0 0
        %321 = vmatpush1.bf16.msra.mxu0 0
        %322 = vmatprep.subr.bf16.mxu0 0
        %323 = vmatpush1.bf16.msra.mxu0 0
        %324 = vmatprep.mubr.bf16.mxu0 0
        %325 = vmatmul.mubr.bf16.gmra.mrb[0].mxu0 %v283
        %v326 = vpop.f32.mrb[0].mxu0
        %v327 = vadd.f32 %v254, %v326
        %v328 = vpop.f32.mrb[0].mxu0
        %v329 = vadd.f32 %v254, %v328
        %v330 = vpop.f32.mrb[0].mxu0
        %v331 = vpop.f32.mrb[0].mxu0
        %332 = vdwg.mxu0
        %v333 = vmax.f32 %v327, 0.0
        %v334 = vmax.f32 %v329, 0.0
        %v335 = vld [vmem:[%s4] sm:$0xff]
        %v336 = vld [vmem:[%s4 + $0x8] sm:$0x1]
        %vm337 = vcmask 64512
        %v339 = vsel %vm337, %v335, 0
        %v342 = vsel %vm337, %v336, 0
        %344 = vmatprep.subr.mxu0 %v334
        %345 = vmatpush1.msra.mxu0 %v333
        %346 = vmatprep.subr.mxu0 0.0
        %347 = vmatpush1.msra.mxu0 0.0
        %348 = vmatprep.subr.mxu0 0.0
        %349 = vmatpush1.msra.mxu0 0.0
        %350 = vmatprep.subr.mxu0 0.0
        %351 = vmatpush1.msra.mxu0 0.0
        %352 = vmatprep.subr.mxu0 0.0
        %353 = vmatpush1.msra.mxu0 0.0
        %354 = vmatprep.subr.mxu0 0.0
        %355 = vmatpush1.msra.mxu0 0.0
        %356 = vmatprep.subr.mxu0 0.0
        %357 = vmatpush1.msra.mxu0 0.0
        %358 = vmatprep.subr.mxu0 0.0
        %359 = vmatpush1.msra.mxu0 0.0
        %360 = vmatprep.subr.mxu0 0.0
        %361 = vmatpush1.msra.mxu0 0.0
        %362 = vmatprep.subr.mxu0 0.0
        %363 = vmatpush1.msra.mxu0 0.0
        %364 = vmatprep.subr.mxu0 0.0
        %365 = vmatpush1.msra.mxu0 0.0
        %366 = vmatprep.subr.mxu0 0.0
        %367 = vmatpush1.msra.mxu0 0.0
        %368 = vmatprep.subr.mxu0 0.0
        %369 = vmatpush1.msra.mxu0 0.0
        %370 = vmatprep.subr.mxu0 0.0
        %371 = vmatpush1.msra.mxu0 0.0
        %372 = vmatprep.subr.mxu0 0.0
        %373 = vmatpush1.msra.mxu0 0.0
        %374 = vmatprep.subr.mxu0 0.0
        %375 = vmatpush1.msra.mxu0 0.0
        %376 = vmatprep.subr.mxu0 0.0
        %377 = vmatpush1.msra.mxu0 0.0
        %378 = vmatprep.subr.mxu0 0.0
        %379 = vmatpush1.msra.mxu0 0.0
        %380 = vmatprep.subr.mxu0 0.0
        %381 = vmatpush1.msra.mxu0 0.0
        %382 = vmatprep.subr.mxu0 0.0
        %383 = vmatpush1.msra.mxu0 0.0
        %384 = vmatprep.subr.mxu0 0.0
        %385 = vmatpush1.msra.mxu0 0.0
        %386 = vmatprep.subr.mxu0 0.0
        %387 = vmatpush1.msra.mxu0 0.0
        %388 = vmatprep.subr.mxu0 0.0
        %389 = vmatpush1.msra.mxu0 0.0
        %390 = vmatprep.subr.mxu0 0.0
        %391 = vmatpush1.msra.mxu0 0.0
        %392 = vmatprep.subr.mxu0 0.0
        %393 = vmatpush1.msra.mxu0 0.0
        %394 = vmatprep.subr.mxu0 0.0
        %395 = vmatpush1.msra.mxu0 0.0
        %396 = vmatprep.subr.mxu0 0.0
        %397 = vmatpush1.msra.mxu0 0.0
        %398 = vmatprep.subr.mxu0 0.0
        %399 = vmatpush1.msra.mxu0 0.0
        %400 = vmatprep.subr.mxu0 0.0
        %401 = vmatpush1.msra.mxu0 0.0
        %402 = vmatprep.subr.mxu0 0.0
        %403 = vmatpush1.msra.mxu0 0.0
        %404 = vmatprep.subr.mxu0 0.0
        %405 = vmatpush1.msra.mxu0 0.0
        %406 = vmatprep.subr.mxu0 0.0
        %407 = vmatpush1.msra.mxu0 0.0
        %408 = vmatprep.mubr.f32.mxu0 0.0
        %409 = vmatmul.mubr.f32.gmra.mrb[0].mxu0 %v339
        %v410 = vpop.f32.mrb[0].mxu0
        %v411 = vadd.f32 0.0, %v410
        %v412 = vpop.f32.mrb[0].mxu0
        %v413 = vadd.f32 0.0, %v412
        %414 = vmatprep.mubr.f32.mxu0 0.0
        %415 = vmatmul.mubr.f32.gmra.mrb[0].mxu0 %v342
        %v416 = vpop.f32.mrb[0].mxu0
        %v417 = vadd.f32 0.0, %v416
        %v418 = vpop.f32.mrb[0].mxu0
        %v419 = vadd.f32 0.0, %v418
        %420 = vdwg.mxu0
        %421 = vst [vmem:[#allocation2] sm:$0xff] 0.0
        %422 = vst [vmem:[#allocation2 + $0x8] sm:$0xff] 0.0
        %423 = vst [vmem:[#allocation2 + $0x10] sm:$0xff] 0.0
        %424 = vst [vmem:[#allocation2 + $0x18] sm:$0xff] 0.0
        %425 = vst [vmem:[#allocation2 + $0x20] sm:$0x1] 0.0
        %426 = vst [vmem:[#allocation2 + $0x28] sm:$0x1] 0.0
        %427 = vst [vmem:[#allocation2 + $0x30] sm:$0x1] 0.0
        %428 = vst [vmem:[#allocation2 + $0x38] sm:$0x1] 0.0
        %429 = vst [vmem:[#allocation2 + $0x8] sm:$0xff] %v411
        %430 = vst [vmem:[#allocation2 + $0x10] sm:$0xff] %v413
        %431 = vst [vmem:[#allocation2 + $0x28] sm:$0x1] %v417
        %432 = vst [vmem:[#allocation2 + $0x30] sm:$0x1] %v419
        %v433 = vlaneseq
        %v434 = vand.u32 %v433, 127
        %v435 = vadd.s32 %v434, 128
        %vm436 = vcmp.lt.s32.totalorder %v434, 0
        %v437 = vsub.s32 0, %v434
        %v438 = vsel %vm436, %v437, %v434
        %v439 = vshrl.u32 %v438, 4
        %v440 = vand.u32 %v438, 15
        %v441 = vsub.s32 0, %v440
        %v442 = vsel %vm436, %v441, %v440
        %vm443 = vcmp.lt.s32.totalorder %v435, 0
        %v444 = vsub.s32 0, %v435
        %v445 = vsel %vm443, %v444, %v435
        %v446 = vshrl.u32 %v445, 4
        %v447 = vand.u32 %v445, 15
        %v448 = vsub.s32 0, %v447
        %v449 = vsel %vm443, %v448, %v447
        %vm450 = vcmp.ne.s32.totalorder %v442, 0
        %vm451 = vcmp.ne.s32.totalorder %v449, 0
        %vm452 = vcmp.lt.s32.totalorder %v442, 0
        %vm453 = vcmp.lt.s32.totalorder %v449, 0
        %vm454 = vmand %vm452, %vm450
        %vm455 = vmand %vm453, %vm451
        %v456 = vadd.s32 %v442, 16
        %v457 = vadd.s32 %v449, 16
        %v458 = vsel %vm454, %v456, %v442
        %v459 = vsel %vm455, %v457, %v449
        %vm460 = vcmp.lt.s32.totalorder %v458, 15
        %vm461 = vcmp.lt.s32.totalorder %v459, 15
        %vm462 = vcmp.gt.s32.totalorder %v458, 0
        %vm463 = vcmp.gt.s32.totalorder %v459, 0
        %v464 = vld [vmem:[#allocation2] ss:$8 sm:$0x7]
        %v466 = vlaneseq
        %v467 = vshrl.u32 %v466, 7
        %v468 = vsub.s32 0, %v467
        %v469 = vrot.slane %v464, %v468
        %v470 = vlaneseq
        %v471 = vshrl.u32 %v470, 7
        %v472 = vsub.s32 1, %v471
        %v473 = vrot.slane %v464, %v472
        %v474 = vlaneseq
        %v475 = vshrl.u32 %v474, 7
        %v476 = vsub.s32 2, %v475
        %v477 = vrot.slane %v464, %v476
        %478 = vrot.lane.b32.xlu0 %v469, 17
        %v479 = vpop.permute.xlu0 %478
        %480 = vrot.lane.b32.xlu0 %v473, 17
        %v481 = vpop.permute.xlu0 %480
        %482 = vrot.lane.b32.xlu0 %v477, 17
        %v483 = vpop.permute.xlu0 %482
        %vm484 = vcmask 138240
        %v485 = vsel %vm484, %v479, %v481
        %v486 = vsel %vm484, %v481, %v483
        %v489 = vsel %vm462, %v485, 0.0
        %v490 = vsel %vm463, %v486, 0.0
        %v493 = vrot.slane %v489, 4
        %v494 = vrot.slane %v490, 4
        %v497 = vadd.f32 %v411, %v493
        %v498 = vadd.f32 %v413, %v494
        %s499 = scalar_lea.vmem [#allocation2], 1
        %v500 = vld [vmem:[%s499] ss:$8 sm:$0x7]
        %v502 = vlaneseq
        %v503 = vshrl.u32 %v502, 7
        %v504 = vsub.s32 0, %v503
        %v505 = vrot.slane %v500, %v504
        %v506 = vlaneseq
        %v507 = vshrl.u32 %v506, 7
        %v508 = vsub.s32 1, %v507
        %v509 = vrot.slane %v500, %v508
        %v510 = vlaneseq
        %v511 = vshrl.u32 %v510, 7
        %v512 = vsub.s32 2, %v511
        %v513 = vrot.slane %v500, %v512
        %514 = vrot.lane.b32.xlu0 %v505, 16
        %v515 = vpop.permute.xlu0 %514
        %516 = vrot.lane.b32.xlu0 %v509, 16
        %v517 = vpop.permute.xlu0 %516
        %518 = vrot.lane.b32.xlu0 %v513, 16
        %v519 = vpop.permute.xlu0 %518
        %vm520 = vcmask 130048
        %v521 = vsel %vm520, %v515, %v517
        %v522 = vsel %vm520, %v517, %v519
        %v525 = vadd.f32 %v497, %v521
        %v526 = vadd.f32 %v498, %v522
        %s527 = scalar_lea.vmem [#allocation2], 2
        %v528 = vld [vmem:[%s527] ss:$8 sm:$0x7]
        %v530 = vlaneseq
        %v531 = vshrl.u32 %v530, 7
        %v532 = vsub.s32 0, %v531
        %v533 = vrot.slane %v528, %v532
        %v534 = vlaneseq
        %v535 = vshrl.u32 %v534, 7
        %v536 = vsub.s32 1, %v535
        %v537 = vrot.slane %v528, %v536
        %v538 = vlaneseq
        %v539 = vshrl.u32 %v538, 7
        %v540 = vsub.s32 2, %v539
        %v541 = vrot.slane %v528, %v540
        %542 = vrot.lane.b32.xlu0 %v533, 15
        %v543 = vpop.permute.xlu0 %542
        %544 = vrot.lane.b32.xlu0 %v537, 15
        %v545 = vpop.permute.xlu0 %544
        %546 = vrot.lane.b32.xlu0 %v541, 15
        %v547 = vpop.permute.xlu0 %546
        %vm548 = vcmask 121856
        %v549 = vsel %vm548, %v543, %v545
        %v550 = vsel %vm548, %v545, %v547
        %v553 = vsel %vm460, %v549, 0.0
        %v554 = vsel %vm461, %v550, 0.0
        %v557 = vrot.slane %v553, 4
        %v558 = vrot.slane %v554, 4
        %v561 = vadd.f32 %v525, %v557
        %v562 = vadd.f32 %v526, %v558
        %s563 = scalar_lea.vmem [#allocation2], 3
        %v564 = vld [vmem:[%s563] ss:$8 sm:$0x7]
        %v566 = vlaneseq
        %v567 = vshrl.u32 %v566, 7
        %v568 = vsub.s32 0, %v567
        %v569 = vrot.slane %v564, %v568
        %v570 = vlaneseq
        %v571 = vshrl.u32 %v570, 7
        %v572 = vsub.s32 1, %v571
        %v573 = vrot.slane %v564, %v572
        %v574 = vlaneseq
        %v575 = vshrl.u32 %v574, 7
        %v576 = vsub.s32 2, %v575
        %v577 = vrot.slane %v564, %v576
        %578 = vrot.lane.b32.xlu0 %v569, 1
        %v579 = vpop.permute.xlu0 %578
        %580 = vrot.lane.b32.xlu0 %v573, 1
        %v581 = vpop.permute.xlu0 %580
        %582 = vrot.lane.b32.xlu0 %v577, 1
        %v583 = vpop.permute.xlu0 %582
        %vm584 = vcmask 7168
        %v585 = vsel %vm584, %v579, %v581
        %v586 = vsel %vm584, %v581, %v583
        %v589 = vsel %vm462, %v585, 0.0
        %v590 = vsel %vm463, %v586, 0.0
        %v593 = vrot.slane %v589, 4
        %v594 = vrot.slane %v590, 4
        %v597 = vadd.f32 %v561, %v593
        %v598 = vadd.f32 %v562, %v594
        %s599 = scalar_lea.vmem [#allocation2], 13
        %v600 = vld [vmem:[%s599] ss:$8 sm:$0x7]
        %v602 = vlaneseq
        %v603 = vshrl.u32 %v602, 7
        %v604 = vsub.s32 0, %v603
        %v605 = vrot.slane %v600, %v604
        %v606 = vlaneseq
        %v607 = vshrl.u32 %v606, 7
        %v608 = vsub.s32 1, %v607
        %v609 = vrot.slane %v600, %v608
        %v610 = vlaneseq
        %v611 = vshrl.u32 %v610, 7
        %v612 = vsub.s32 2, %v611
        %v613 = vrot.slane %v600, %v612
        %614 = vrot.lane.b32.xlu0 %v605, 127
        %v615 = vpop.permute.xlu0 %614
        %616 = vrot.lane.b32.xlu0 %v609, 127
        %v617 = vpop.permute.xlu0 %616
        %618 = vrot.lane.b32.xlu0 %v613, 127
        %v619 = vpop.permute.xlu0 %618
        %vm620 = vcmask 1039360
        %v621 = vsel %vm620, %v615, %v617
        %v622 = vsel %vm620, %v617, %v619
        %v625 = vsel %vm460, %v621, 0.0
        %v626 = vsel %vm461, %v622, 0.0
        %v629 = vrot.slane %v625, 4
        %v630 = vrot.slane %v626, 4
        %v633 = vadd.f32 %v597, %v629
        %v634 = vadd.f32 %v598, %v630
        %s635 = scalar_lea.vmem [#allocation2], 14
        %v636 = vld [vmem:[%s635] ss:$8 sm:$0x7]
        %v638 = vlaneseq
        %v639 = vshrl.u32 %v638, 7
        %v640 = vsub.s32 0, %v639
        %v641 = vrot.slane %v636, %v640
        %v642 = vlaneseq
        %v643 = vshrl.u32 %v642, 7
        %v644 = vsub.s32 1, %v643
        %v645 = vrot.slane %v636, %v644
        %v646 = vlaneseq
        %v647 = vshrl.u32 %v646, 7
        %v648 = vsub.s32 2, %v647
        %v649 = vrot.slane %v636, %v648
        %650 = vrot.lane.b32.xlu0 %v641, 113
        %v651 = vpop.permute.xlu0 %650
        %652 = vrot.lane.b32.xlu0 %v645, 113
        %v653 = vpop.permute.xlu0 %652
        %654 = vrot.lane.b32.xlu0 %v649, 113
        %v655 = vpop.permute.xlu0 %654
        %vm656 = vcmask 924672
        %v657 = vsel %vm656, %v651, %v653
        %v658 = vsel %vm656, %v653, %v655
        %v661 = vsel %vm462, %v657, 0.0
        %v662 = vsel %vm463, %v658, 0.0
        %v665 = vrot.slane %v661, 4
        %v666 = vrot.slane %v662, 4
        %v669 = vadd.f32 %v633, %v665
        %v670 = vadd.f32 %v634, %v666
        %s671 = scalar_lea.vmem [#allocation2], 15
        %v672 = vld [vmem:[%s671] ss:$8 sm:$0x7]
        %v674 = vlaneseq
        %v675 = vshrl.u32 %v674, 7
        %v676 = vsub.s32 0, %v675
        %v677 = vrot.slane %v672, %v676
        %v678 = vlaneseq
        %v679 = vshrl.u32 %v678, 7
        %v680 = vsub.s32 1, %v679
        %v681 = vrot.slane %v672, %v680
        %v682 = vlaneseq
        %v683 = vshrl.u32 %v682, 7
        %v684 = vsub.s32 2, %v683
        %v685 = vrot.slane %v672, %v684
        %686 = vrot.lane.b32.xlu0 %v677, 112
        %v687 = vpop.permute.xlu0 %686
        %688 = vrot.lane.b32.xlu0 %v681, 112
        %v689 = vpop.permute.xlu0 %688
        %690 = vrot.lane.b32.xlu0 %v685, 112
        %v691 = vpop.permute.xlu0 %690
        %vm692 = vcmask 916480
        %v693 = vsel %vm692, %v687, %v689
        %v694 = vsel %vm692, %v689, %v691
        %v697 = vadd.f32 %v669, %v693
        %v698 = vadd.f32 %v670, %v694
        %s699 = scalar_lea.vmem [#allocation2], 40
        %v700 = vld [vmem:[%s699] ss:$8 sm:$0x7]
        %v702 = vlaneseq
        %v703 = vshrl.u32 %v702, 7
        %v704 = vsub.s32 0, %v703
        %v705 = vrot.slane %v700, %v704
        %v706 = vlaneseq
        %v707 = vshrl.u32 %v706, 7
        %v708 = vsub.s32 1, %v707
        %v709 = vrot.slane %v700, %v708
        %v710 = vlaneseq
        %v711 = vshrl.u32 %v710, 7
        %v712 = vsub.s32 2, %v711
        %v713 = vrot.slane %v700, %v712
        %714 = vrot.lane.b32.xlu0 %v705, 111
        %v715 = vpop.permute.xlu0 %714
        %716 = vrot.lane.b32.xlu0 %v709, 111
        %v717 = vpop.permute.xlu0 %716
        %718 = vrot.lane.b32.xlu0 %v713, 111
        %v719 = vpop.permute.xlu0 %718
        %vm720 = vcmask 908288
        %v721 = vsel %vm720, %v715, %v717
        %v722 = vsel %vm720, %v717, %v719
        %v725 = vsel %vm460, %v721, 0.0
        %v726 = vsel %vm461, %v722, 0.0
        %v729 = vrot.slane %v725, 4
        %v730 = vrot.slane %v726, 4
        %v733 = vadd.f32 %v697, %v729
        %v734 = vadd.f32 %v698, %v730
        %v737 = vrot.slane %v733, 4
        %v738 = vrot.slane %v734, 4
        %741 = vrot.lane.b32.xlu0 %v737, 16
        %v742 = vpop.permute.xlu0 %741
        %743 = vrot.lane.b32.xlu0 %v738, 16
        %v744 = vpop.permute.xlu0 %743
        %vm745 = vcmp.lt.s32.totalorder %v434, 16
        %v746 = vsel %vm745, %v742, %v744
        %v747 = vsel %vm745, %v744, %v742
        %v750 = vrot.slane %v747, 4
        %v751 = vrot.slane %v746, 4
        %v754 = vmax.f32 %v733, %v750
        %v755 = vmax.f32 %v734, %v751
        %v758 = vrot.slane %v754, 4
        %v759 = vrot.slane %v755, 4
        %762 = vrot.lane.b32.xlu0 %v758, 32
        %v763 = vpop.permute.xlu0 %762
        %764 = vrot.lane.b32.xlu0 %v759, 32
        %v765 = vpop.permute.xlu0 %764
        %vm766 = vcmp.lt.s32.totalorder %v434, 32
        %v767 = vsel %vm766, %v763, %v765
        %v768 = vsel %vm766, %v765, %v763
        %v771 = vrot.slane %v768, 4
        %v772 = vrot.slane %v767, 4
        %v775 = vmax.f32 %v754, %v771
        %v776 = vmax.f32 %v755, %v772
        %v779 = vrot.slane %v775, 4
        %v780 = vrot.slane %v776, 4
        %783 = vrot.lane.b32.xlu0 %v779, 64
        %v784 = vpop.permute.xlu0 %783
        %785 = vrot.lane.b32.xlu0 %v780, 64
        %v786 = vpop.permute.xlu0 %785
        %vm787 = vcmp.lt.s32.totalorder %v434, 64
        %v788 = vsel %vm787, %v784, %v786
        %v789 = vsel %vm787, %v786, %v784
        %v792 = vrot.slane %v789, 4
        %v793 = vrot.slane %v788, 4
        %v796 = vmax.f32 %v775, %v792
        %v797 = vmax.f32 %v776, %v793
        %v800 = vrot.slane %v796, 4
        %v801 = vrot.slane %v797, 4
        %v802 = vrot.slane %v801, 4
        %v803 = vrot.slane %v800, 4
        %v806 = vmax.f32 %v796, %v802
        %v807 = vmax.f32 %v797, %v803
        %v808 = vsub.f32 %v733, %v806
        %v809 = vsub.f32 %v734, %v807
        %v810 = vmul.f32 %v808, 1.442695
        %v811 = vpow.pop %v810
        %v812 = vmul.f32 %v809, 1.442695
        %v813 = vpow.pop %v812
        %v816 = vrot.slane %v811, 4
        %v817 = vrot.slane %v813, 4
        %820 = vrot.lane.b32.xlu0 %v816, 16
        %v821 = vpop.permute.xlu0 %820
        %822 = vrot.lane.b32.xlu0 %v817, 16
        %v823 = vpop.permute.xlu0 %822
        %v824 = vsel %vm745, %v821, %v823
        %v825 = vsel %vm745, %v823, %v821
        %v828 = vrot.slane %v825, 4
        %v829 = vrot.slane %v824, 4
        %v832 = vadd.f32 %v811, %v828
        %v833 = vadd.f32 %v813, %v829
        %v836 = vrot.slane %v832, 4
        %v837 = vrot.slane %v833, 4
        %840 = vrot.lane.b32.xlu0 %v836, 32
        %v841 = vpop.permute.xlu0 %840
        %842 = vrot.lane.b32.xlu0 %v837, 32
        %v843 = vpop.permute.xlu0 %842
        %v844 = vsel %vm766, %v841, %v843
        %v845 = vsel %vm766, %v843, %v841
        %v848 = vrot.slane %v845, 4
        %v849 = vrot.slane %v844, 4
        %v852 = vadd.f32 %v832, %v848
        %v853 = vadd.f32 %v833, %v849
        %v856 = vrot.slane %v852, 4
        %v857 = vrot.slane %v853, 4
        %860 = vrot.lane.b32.xlu0 %v856, 64
        %v861 = vpop.permute.xlu0 %860
        %862 = vrot.lane.b32.xlu0 %v857, 64
        %v863 = vpop.permute.xlu0 %862
        %v864 = vsel %vm787, %v861, %v863
        %v865 = vsel %vm787, %v863, %v861
        %v868 = vrot.slane %v865, 4
        %v869 = vrot.slane %v864, 4
        %v872 = vadd.f32 %v852, %v868
        %v873 = vadd.f32 %v853, %v869
        %v876 = vrot.slane %v872, 4
        %v877 = vrot.slane %v873, 4
        %v878 = vrot.slane %v877, 4
        %v879 = vrot.slane %v876, 4
        %v882 = vadd.f32 %v872, %v878
        %v883 = vadd.f32 %v873, %v879
        %v884 = vrcp.pop %v882
        %v885 = vrcp.pop %v883
        %v886 = vmul.f32 %v811, %v884
        %v887 = vmul.f32 %v813, %v885
        %v888 = vld [vmem:[%s242] sm:$0xff]
        %v889 = vlaneseq
        %v890 = vshrl.u32 %v889, 7
        %v891 = vsub.s32 4, %v890
        %v892 = vrot.slane %v886, %v891
        %v893 = vlaneseq
        %v894 = vshrl.u32 %v893, 7
        %v895 = vsub.s32 4, %v894
        %v896 = vrot.slane %v887, %v895
        %v899 = vcombine.low %v892, %v896
        %v901 = vmul.f32 %v888, %v899
        %v903 = vcombine.high %v901, %v901
        %905 = vrot.lane.b32.xlu0 %v901, 16
        %v906 = vpop.permute.xlu0 %905
        %907 = vrot.lane.b32.xlu0 %v903, 16
        %v908 = vpop.permute.xlu0 %907
        %v909 = vsel %vm745, %v906, %v908
        %v910 = vsel %vm745, %v908, %v906
        %v913 = vcombine.low %v910, %v909
        %v915 = vadd.f32 %v901, %v913
        %v917 = vcombine.high %v915, %v915
        %919 = vrot.lane.b32.xlu0 %v915, 32
        %v920 = vpop.permute.xlu0 %919
        %921 = vrot.lane.b32.xlu0 %v917, 32
        %v922 = vpop.permute.xlu0 %921
        %v923 = vsel %vm766, %v920, %v922
        %v924 = vsel %vm766, %v922, %v920
        %v927 = vcombine.low %v924, %v923
        %v929 = vadd.f32 %v915, %v927
        %v931 = vcombine.high %v929, %v929
        %933 = vrot.lane.b32.xlu0 %v929, 64
        %v934 = vpop.permute.xlu0 %933
        %935 = vrot.lane.b32.xlu0 %v931, 64
        %v936 = vpop.permute.xlu0 %935
        %v937 = vsel %vm787, %v934, %v936
        %v938 = vsel %vm787, %v936, %v934
        %v941 = vcombine.low %v938, %v937
        %v943 = vadd.f32 %v929, %v941
        %v945 = vcombine.high %v943, %v943
        %v946 = vcombine.low %v945, %v943
        %v948 = vadd.f32 %v943, %v946
        %vm949 = vcmask 125952
        %950 = vst.msk [vmem:[%s232] sm:$0xf] %vm949, %v948
        %s951 = sand.u32 %s142, 1
        %s952 = scalar_lea.sflag [#allocation4], %s951
        %s953 = sand.u32 %s142, 1
        %s954 = smul.addr %s953, 4
        %s955 = scalar_lea.vmem [#allocation3], %s954
        // Predicated region
        $region41: #{depth_reducer_forward.1} parent=39 // pred_check
          %p956 = pneg %p152
        $region42: #{depth_reducer_forward.1} parent=39 // pred_check_branch
          %958 = sbr.rel (%p956) target = $region44
        $region43: #{depth_reducer_forward.1} parent=39 // pred_region
          %s960 = ssub.s32 64, 64
          %961 = vsyncadd %s952, %s960
          %s962 = smul.addr %s19, 64
          %s963 = scalar_lea.hbm %s5, %s962
          %s965 = sshll.u32 %s955, 4
          %s966 = int_to_ptr.vmem [resolvable:$true] %s965
          %968 = dma.vmem_to_hbm [thread:$0]  %s966, 64, %s963, %s952
        $region44: #{depth_reducer_forward.1} parent=39 // pred_fallthru
          _
      $region40: #{depth_reducer_forward.1} parent=5 // pred_fallthru
        _
      %p969 = scmp.le.s32.totalorder 2, %s14
      // Predicated region
      $region45: #{depth_reducer_forward.1} parent=5 // pred_check
        %p970 = pneg %p969
      $region46: #{depth_reducer_forward.1} parent=5 // pred_check_branch
        %972 = sbr.rel (%p970) target = $region48
      $region47: #{depth_reducer_forward.1} parent=5 // pred_region
        %s973 = ssub.s32 %s14, 2
        // Predicated region
        $region49: #{depth_reducer_forward.1} parent=47 // pred_check
          %p974 = pneg %p158
        $region50: #{depth_reducer_forward.1} parent=47 // pred_check_branch
          %976 = sbr.rel (%p974) target = $region52
        $region51: #{depth_reducer_forward.1} parent=47 // pred_region
          %s977 = sand.u32 %s143, 1
          %s978 = scalar_lea.sflag [#allocation4], %s977
          %s979 = sand.u32 %s143, 1
          %s980 = smul.addr %s979, 4
          %s981 = scalar_lea.vmem [#allocation3], %s980
          %982 = dma.done %s978, 64
        $region52: #{depth_reducer_forward.1} parent=47 // pred_fallthru
          _
      $region48: #{depth_reducer_forward.1} parent=5 // pred_fallthru
        _
    $region6: #{depth_reducer_forward.1} parent=1 // loop_footer
      %s18 = sadd.s32 1, %s14
    $region7: #{depth_reducer_forward.1} parent=1 // loop_footer_branch
      %13 = sbr.rel target = $region3
    $region8: #{depth_reducer_forward.1} parent=1 // loop_exit
      _
    %983 = vsyncpa [#allocation4], 1
    %s984 = scalar_lea.sflag [#allocation4], 1
    %985 = vsyncpa %s984, 1

</llo_original>
